<compile_context>
chip_gen: v7x
topology: tpu7x:2x2x1
jax: 0.10.0
libtpu: 0.0.40
codegen_flags: <defaults>
</compile_context>

<pallas_src>
import jax
import jax.numpy as jnp
from jax.experimental import pallas as pl
from jax.experimental.pallas import tpu as pltpu


# ----------------------------------------------------------------------------
# Pallas kernel: merged-K conv (padding fused) + bias + ReLU
# ----------------------------------------------------------------------------
def _make_conv_kernel(Nb, H, Ho, KH, pad, WCin):
    """Builds the kernel for one grid step covering Nb batch elements."""

    def kernel(x_ref, w_ref, b_ref, o_ref, lhs_ref):
        # x_ref:   (Nb, H, W*Cin)        bf16  channels fused onto lanes
        # w_ref:   (KH*W*Cin, Wo*Cout)   bf16  merged block-Toeplitz weights
        # b_ref:   (1, Wo*Cout)          f32   bias tiled over output width
        # o_ref:   (Nb*Ho, Wo*Cout)      f32 (or bf16) lane-dense output slab
        # lhs_ref: (Nb*Ho, KH*W*Cin)     bf16  LHS staging scratch
        #
        # LHS layout: row (nb*Ho + ho), lanes [kh*W*Cin + w*Cin + ci] hold
        # x[nb, ho + kh - pad, w, ci], or 0 when the height tap lands in the
        # zero padding.  Width padding never appears in the contraction (those
        # taps were dropped on the host), so every copy below is a
        # lane-aligned store of width W*Cin.
        for nb in range(Nb):
            r0 = nb * Ho
            for kh in range(KH):
                c0 = kh * WCin
                lo = max(0, pad - kh)            # first output row w/ valid tap
                hi = min(Ho, H + pad - kh)       # one past the last valid row
                lhs_ref[r0 + lo:r0 + hi, c0:c0 + WCin] = x_ref[
                    nb, lo + kh - pad:hi + kh - pad, :]
                # Height-halo rows -> zeros.  Redone every step (cheap, and
                # safe under megacore / dual-TC sharding of the batch axis).
                if lo > 0:
                    lhs_ref[r0:r0 + lo, c0:c0 + WCin] = jnp.zeros(
                        (lo, WCin), lhs_ref.dtype)
                if hi < Ho:
                    lhs_ref[r0 + hi:r0 + Ho, c0:c0 + WCin] = jnp.zeros(
                        (Ho - hi, WCin), lhs_ref.dtype)

        # One MXU matmul: (Nb*Ho, KH*W*Cin) x (KH*W*Cin, Wo*Cout), f32 acc.
        acc = jnp.dot(lhs_ref[...], w_ref[...],
                      preferred_element_type=jnp.float32)

        # Bias + ReLU in f32, single lane-dense (unmasked) store.
        o_ref[...] = jnp.maximum(acc + b_ref[...], 0.0).astype(o_ref.dtype)

    return kernel


# ----------------------------------------------------------------------------
# Host-side glue: weight_norm + merged block-Toeplitz weight layout
# ----------------------------------------------------------------------------
def _weight_norm(v, g):
    """PyTorch weight_norm (dim=0): w = g * v / ||v||, norm over (Cin, kh, kw).

    Matches PyTorch exactly (no epsilon): an all-zero filter v gives NaN."""
    norm = jnp.sqrt(jnp.sum(v * v, axis=(1, 2, 3), keepdims=True))
    return g.reshape(-1, 1, 1, 1) * v / norm


def _build_merged_toeplitz(w_oihw, W, pad, dtype=jnp.bfloat16):
    """Merged-K block-Toeplitz weights over (kh, real width column, cin).

    wmat[kh*W*Cin + w*Cin + ci, wo*Cout + co] = w[co, ci, kh, w - wo + pad]
    (zero when the width tap index w - wo + pad falls outside [0, KW)).
    Width-padding columns are not represented at all -- they would multiply
    zeros -- so the kernel's LHS needs no width-halo lanes.
    """
    Cout, Cin, KH, KW = w_oihw.shape
    Wo = W + 2 * pad - KW + 1
    w_k = jnp.transpose(w_oihw, (2, 3, 1, 0))            # (KH, KW, Cin, Cout)
    wi = jnp.arange(W)[:, None]                          # real input column
    wo = jnp.arange(Wo)[None, :]                         # output column
    kw = wi - wo + pad                                   # width tap (W, Wo)
    valid = (kw >= 0) & (kw < KW)
    taps = w_k[:, jnp.clip(kw, 0, KW - 1)]               # (KH, W, Wo, Cin, Cout)
    taps = jnp.where(valid[None, :, :, None, None], taps, 0.0)
    wmat = jnp.transpose(taps, (0, 1, 3, 2, 4))          # (KH, W, Cin, Wo, Cout)
    return wmat.reshape(KH * W * Cin, Wo * Cout).astype(dtype)


# ----------------------------------------------------------------------------
# Lane-fused NHWC forward (preferred contract: no layout transposes needed)
# ----------------------------------------------------------------------------
def basic_conv2d_forward_nhwc(x_nhwc, v, g, b, *, stride=1, padding=1,
                              block_batch=None, out_dtype=jnp.float32):
    """wn(Conv2d) + ReLU on NHWC input; returns (N, Ho, Wo, Cout) in out_dtype."""
    assert stride == 1, "stride != 1 not implemented"
    # TODO(synk): strided conv (needs a strided Toeplitz column map).
    N, H, W, Cin = x_nhwc.shape
    Cout, Cin_w, KH, KW = v.shape
    assert Cin_w == Cin
    P = padding
    Ho = H + 2 * P - KH + 1
    Wo = W + 2 * P - KW + 1

    w_oihw = _weight_norm(v, g)                          # (Cout, Cin, KH, KW)
    w_big = _build_merged_toeplitz(w_oihw, W, P)         # (KH*W*Cin, Wo*Cout) bf16
    b_tiled = jnp.tile(b.astype(jnp.float32), Wo).reshape(1, Wo * Cout)

    # bf16 activations end-to-end (MXU operands are bf16 anyway); (W, C)
    # fused onto the lane axis via a free reshape.
    x = x_nhwc.reshape(N, H, W * Cin).astype(jnp.bfloat16)

    # Batch stacking: Nb elements per grid step so the MXU M dim is ~128.
    # For realistic N this still leaves >= 2 'parallel' grid steps (keeps
    # both v7x TensorCores busy); at tiny N the M-fill is the bigger win.
    if block_batch is None:
        block_batch = max(1, min(N, 128 // max(1, Ho)))
    Nb = int(block_batch)
    G = -(-N // Nb)                                      # ceil(N / Nb)
    Ntot = G * Nb
    if Ntot != N:
        x = jnp.concatenate(
            [x, jnp.zeros((Ntot - N, H, W * Cin), x.dtype)], axis=0)

    kernel = _make_conv_kernel(Nb, H, Ho, KH, P, W * Cin)

    out2d = pl.pallas_call(
        kernel,
        out_shape=jax.ShapeDtypeStruct((Ntot * Ho, Wo * Cout), out_dtype),
        grid=(G,),
        in_specs=[
            pl.BlockSpec((Nb, H, W * Cin), lambda n: (n, 0, 0)),
            # grid-invariant blocks: fetched once, no per-step re-DMA
            pl.BlockSpec((KH * W * Cin, Wo * Cout), lambda n: (0, 0)),
            pl.BlockSpec((1, Wo * Cout), lambda n: (0, 0)),
        ],
        out_specs=pl.BlockSpec((Nb * Ho, Wo * Cout), lambda n: (n, 0)),
        scratch_shapes=[pltpu.VMEM((Nb * Ho, KH * W * Cin), jnp.bfloat16)],
        compiler_params=pltpu.CompilerParams(
            dimension_semantics=("parallel",)),
    )(x, w_big, b_tiled)

    return out2d.reshape(Ntot, Ho, Wo, Cout)[:N]


# ----------------------------------------------------------------------------
# PyTorch-layout forward: NCHW f32 in -> NCHW f32 out (module semantics)
# ----------------------------------------------------------------------------
def basic_conv2d_forward(x_nchw, v, g, b, *, stride=1, padding=1,
                         block_batch=None):
    x_nhwc = jnp.transpose(x_nchw, (0, 2, 3, 1))
    out = basic_conv2d_forward_nhwc(
        x_nhwc, v, g, b, stride=stride, padding=padding,
        block_batch=block_batch, out_dtype=jnp.float32)
    return jnp.transpose(out, (0, 3, 1, 2))


if __name__ == "__main__":
    # Small shapes consistent with the module; W*Cin = 128 -> aligned lanes.
    N, Cin, H, W = 2, 8, 16, 16
    Cout, K, stride, padding = 32, 3, 1, 1

    key = jax.random.PRNGKey(0)
    kx, kv, kg, kb = jax.random.split(key, 4)
    x = jax.random.normal(kx, (N, Cin, H, W), jnp.float32)
    v = jax.random.normal(kv, (Cout, Cin, K, K), jnp.float32) * 0.1
    g = 1.0 + 0.1 * jax.random.normal(kg, (Cout,), jnp.float32)
    b = 0.1 * jax.random.normal(kb, (Cout,), jnp.float32)

    out = jax.block_until_ready(
        basic_conv2d_forward(x, v, g, b, stride=stride, padding=padding))
    assert out.shape == (N, Cout, H, W), out.shape
    assert out.dtype == jnp.float32

    # Pure-JAX reference with the same bf16 rounding of the MXU operands
    # (f32 accumulation; error grows mildly with Cin*KH*KW -- documented).
    w_eff = _weight_norm(v, g)
    w_hwio = jnp.transpose(w_eff, (2, 3, 1, 0)).astype(jnp.bfloat16).astype(jnp.float32)
    x_nhwc = jnp.transpose(x, (0, 2, 3, 1)).astype(jnp.bfloat16).astype(jnp.float32)
    ref = jax.lax.conv_general_dilated(
        x_nhwc, w_hwio, window_strides=(1, 1),
        padding=((padding, padding), (padding, padding)),
        dimension_numbers=("NHWC", "HWIO", "NHWC"),
        precision=jax.lax.Precision.HIGHEST)
    ref = jnp.maximum(ref + b, 0.0)
    ref = jnp.transpose(ref, (0, 3, 1, 2))
    max_err = float(jnp.max(jnp.abs(out - ref)))
    assert max_err < 1e-2, max_err

    print("KERNEL_OK")
</pallas_src>

<mosaic_0001>
module attributes {stable_mosaic.version = 11 : i64} {
  func.func @kernel(%arg0: i32, %arg1: memref<2x16x128xbf16, #tpu.memory_space<vmem>>, %arg2: memref<384x512xbf16, #tpu.memory_space<vmem>>, %arg3: memref<1x512xf32, #tpu.memory_space<vmem>>, %arg4: memref<32x512xf32, #tpu.memory_space<vmem>>, %arg5: memref<32x384xbf16, #tpu.memory_space<vmem>>) attributes {dimension_semantics = [#tpu.dimension_semantics<parallel>], iteration_bounds = array<i64: 1>, scalar_prefetch = 0 : i64, scratch_operands = 1 : i64, tpu.core_type = #tpu.core_type<tc>, window_params = [{transform_indices = @transform_0, window_bounds = array<i64: 2, 16, 128>}, {pipeline_mode = #tpu.pipeline_mode<synchronous>, transform_indices = @transform_1, window_bounds = array<i64: 384, 512>}, {pipeline_mode = #tpu.pipeline_mode<synchronous>, transform_indices = @transform_2, window_bounds = array<i64: 1, 512>}, {transform_indices = @transform_3, window_bounds = array<i64: 32, 512>}]} {
    %c0 = arith.constant 0 : index
    %c0_0 = arith.constant 0 : index
    %c0_1 = arith.constant 0 : index
    %0 = vector.load %arg1[%c0, %c0_0, %c0_1] : memref<2x16x128xbf16, #tpu.memory_space<vmem>>, vector<1x15x128xbf16>
    %1 = vector.shape_cast %0 : vector<1x15x128xbf16> to vector<15x128xbf16>
    %c1 = arith.constant 1 : index
    %c0_2 = arith.constant 0 : index
    %2 = vector.load %arg5[%c1, %c0_2] : memref<32x384xbf16, #tpu.memory_space<vmem>>, vector<15x128xbf16>
    tpu.vector_store %arg5[%c1, %c0_2], %1 {strides = array<i32>} : memref<32x384xbf16, #tpu.memory_space<vmem>>, vector<15x128xbf16>,
    %cst = arith.constant 0.000000e+00 : bf16
    %3 = vector.broadcast %cst : bf16 to vector<1x128xbf16>
    %c0_3 = arith.constant 0 : index
    %c0_4 = arith.constant 0 : index
    %4 = vector.load %arg5[%c0_3, %c0_4] : memref<32x384xbf16, #tpu.memory_space<vmem>>, vector<1x128xbf16>
    tpu.vector_store %arg5[%c0_3, %c0_4], %3 {strides = array<i32>} : memref<32x384xbf16, #tpu.memory_space<vmem>>, vector<1x128xbf16>,
    %c0_5 = arith.constant 0 : index
    %c0_6 = arith.constant 0 : index
    %c0_7 = arith.constant 0 : index
    %5 = vector.load %arg1[%c0_5, %c0_6, %c0_7] : memref<2x16x128xbf16, #tpu.memory_space<vmem>>, vector<1x16x128xbf16>
    %6 = vector.shape_cast %5 : vector<1x16x128xbf16> to vector<16x128xbf16>
    %c0_8 = arith.constant 0 : index
    %c128 = arith.constant 128 : index
    %7 = vector.load %arg5[%c0_8, %c128] : memref<32x384xbf16, #tpu.memory_space<vmem>>, vector<16x128xbf16>
    tpu.vector_store %arg5[%c0_8, %c128], %6 {strides = array<i32>} : memref<32x384xbf16, #tpu.memory_space<vmem>>, vector<16x128xbf16>,
    %c0_9 = arith.constant 0 : index
    %c1_10 = arith.constant 1 : index
    %c0_11 = arith.constant 0 : index
    %8 = vector.load %arg1[%c0_9, %c1_10, %c0_11] : memref<2x16x128xbf16, #tpu.memory_space<vmem>>, vector<1x15x128xbf16>
    %9 = vector.shape_cast %8 : vector<1x15x128xbf16> to vector<15x128xbf16>
    %c0_12 = arith.constant 0 : index
    %c256 = arith.constant 256 : index
    %10 = vector.load %arg5[%c0_12, %c256] : memref<32x384xbf16, #tpu.memory_space<vmem>>, vector<15x128xbf16>
    tpu.vector_store %arg5[%c0_12, %c256], %9 {strides = array<i32>} : memref<32x384xbf16, #tpu.memory_space<vmem>>, vector<15x128xbf16>,
    %cst_13 = arith.constant 0.000000e+00 : bf16
    %11 = vector.broadcast %cst_13 : bf16 to vector<1x128xbf16>
    %c15 = arith.constant 15 : index
    %c256_14 = arith.constant 256 : index
    %12 = vector.load %arg5[%c15, %c256_14] : memref<32x384xbf16, #tpu.memory_space<vmem>>, vector<1x128xbf16>
    tpu.vector_store %arg5[%c15, %c256_14], %11 {strides = array<i32>} : memref<32x384xbf16, #tpu.memory_space<vmem>>, vector<1x128xbf16>,
    %c1_15 = arith.constant 1 : index
    %c0_16 = arith.constant 0 : index
    %c0_17 = arith.constant 0 : index
    %13 = vector.load %arg1[%c1_15, %c0_16, %c0_17] : memref<2x16x128xbf16, #tpu.memory_space<vmem>>, vector<1x15x128xbf16>
    %14 = vector.shape_cast %13 : vector<1x15x128xbf16> to vector<15x128xbf16>
    %c17 = arith.constant 17 : index
    %c0_18 = arith.constant 0 : index
    %15 = vector.load %arg5[%c17, %c0_18] : memref<32x384xbf16, #tpu.memory_space<vmem>>, vector<15x128xbf16>
    tpu.vector_store %arg5[%c17, %c0_18], %14 {strides = array<i32>} : memref<32x384xbf16, #tpu.memory_space<vmem>>, vector<15x128xbf16>,
    %cst_19 = arith.constant 0.000000e+00 : bf16
    %16 = vector.broadcast %cst_19 : bf16 to vector<1x128xbf16>
    %c16 = arith.constant 16 : index
    %c0_20 = arith.constant 0 : index
    %17 = vector.load %arg5[%c16, %c0_20] : memref<32x384xbf16, #tpu.memory_space<vmem>>, vector<1x128xbf16>
    tpu.vector_store %arg5[%c16, %c0_20], %16 {strides = array<i32>} : memref<32x384xbf16, #tpu.memory_space<vmem>>, vector<1x128xbf16>,
    %c1_21 = arith.constant 1 : index
    %c0_22 = arith.constant 0 : index
    %c0_23 = arith.constant 0 : index
    %18 = vector.load %arg1[%c1_21, %c0_22, %c0_23] : memref<2x16x128xbf16, #tpu.memory_space<vmem>>, vector<1x16x128xbf16>
    %19 = vector.shape_cast %18 : vector<1x16x128xbf16> to vector<16x128xbf16>
    %c16_24 = arith.constant 16 : index
    %c128_25 = arith.constant 128 : index
    %20 = vector.load %arg5[%c16_24, %c128_25] : memref<32x384xbf16, #tpu.memory_space<vmem>>, vector<16x128xbf16>
    tpu.vector_store %arg5[%c16_24, %c128_25], %19 {strides = array<i32>} : memref<32x384xbf16, #tpu.memory_space<vmem>>, vector<16x128xbf16>,
    %c1_26 = arith.constant 1 : index
    %c1_27 = arith.constant 1 : index
    %c0_28 = arith.constant 0 : index
    %21 = vector.load %arg1[%c1_26, %c1_27, %c0_28] : memref<2x16x128xbf16, #tpu.memory_space<vmem>>, vector<1x15x128xbf16>
    %22 = vector.shape_cast %21 : vector<1x15x128xbf16> to vector<15x128xbf16>
    %c16_29 = arith.constant 16 : index
    %c256_30 = arith.constant 256 : index
    %23 = vector.load %arg5[%c16_29, %c256_30] : memref<32x384xbf16, #tpu.memory_space<vmem>>, vector<15x128xbf16>
    tpu.vector_store %arg5[%c16_29, %c256_30], %22 {strides = array<i32>} : memref<32x384xbf16, #tpu.memory_space<vmem>>, vector<15x128xbf16>,
    %cst_31 = arith.constant 0.000000e+00 : bf16
    %24 = vector.broadcast %cst_31 : bf16 to vector<1x128xbf16>
    %c31 = arith.constant 31 : index
    %c256_32 = arith.constant 256 : index
    %25 = vector.load %arg5[%c31, %c256_32] : memref<32x384xbf16, #tpu.memory_space<vmem>>, vector<1x128xbf16>
    tpu.vector_store %arg5[%c31, %c256_32], %24 {strides = array<i32>} : memref<32x384xbf16, #tpu.memory_space<vmem>>, vector<1x128xbf16>,
    %c0_33 = arith.constant 0 : index
    %c0_34 = arith.constant 0 : index
    %26 = vector.load %arg5[%c0_33, %c0_34] : memref<32x384xbf16, #tpu.memory_space<vmem>>, vector<32x384xbf16>
    %c0_35 = arith.constant 0 : index
    %c0_36 = arith.constant 0 : index
    %27 = vector.load %arg2[%c0_35, %c0_36] : memref<384x512xbf16, #tpu.memory_space<vmem>>, vector<384x512xbf16>
    %cst_37 = arith.constant dense<0.000000e+00> : vector<32x512xf32>
    %28 = tpu.matmul %26, %27, %cst_37 {dimension_numbers = #tpu.dot_dimension_numbers<[1], [0], [0], [1], [0, 0, 1, 1], [], []>} : vector<32x384xbf16>, vector<384x512xbf16>, vector<32x512xf32> -> vector<32x512xf32>
    %c0_38 = arith.constant 0 : index
    %c0_39 = arith.constant 0 : index
    %29 = vector.load %arg3[%c0_38, %c0_39] : memref<1x512xf32, #tpu.memory_space<vmem>>, vector<1x512xf32>
    %30 = vector.broadcast %29 : vector<1x512xf32> to vector<32x512xf32>
    %31 = arith.addf %28, %30 : vector<32x512xf32>
    %cst_40 = arith.constant 0.000000e+00 : f32
    %32 = vector.broadcast %cst_40 : f32 to vector<32x512xf32>
    %33 = arith.maximumf %31, %32 : vector<32x512xf32>
    %c0_41 = arith.constant 0 : index
    %c0_42 = arith.constant 0 : index
    %34 = vector.load %arg4[%c0_41, %c0_42] : memref<32x512xf32, #tpu.memory_space<vmem>>, vector<32x512xf32>
    tpu.vector_store %arg4[%c0_41, %c0_42], %33 {strides = array<i32>} : memref<32x512xf32, #tpu.memory_space<vmem>>, vector<32x512xf32>,
    return
  }
  func.func @transform_0(%arg0: i32) -> (i32, i32, i32) {
    %c0_i32 = arith.constant 0 : i32
    %c0_i32_0 = arith.constant 0 : i32
    %c0_i32_1 = arith.constant 0 : i32
    return %arg0, %c0_i32, %c0_i32_0 : i32, i32, i32
  }
  func.func @transform_1(%arg0: i32) -> (i32, i32) {
    %c0_i32 = arith.constant 0 : i32
    %c0_i32_0 = arith.constant 0 : i32
    %c0_i32_1 = arith.constant 0 : i32
    return %c0_i32, %c0_i32_0 : i32, i32
  }
  func.func @transform_2(%arg0: i32) -> (i32, i32) {
    %c0_i32 = arith.constant 0 : i32
    %c0_i32_0 = arith.constant 0 : i32
    %c0_i32_1 = arith.constant 0 : i32
    return %c0_i32, %c0_i32_0 : i32, i32
  }
  func.func @transform_3(%arg0: i32) -> (i32, i32) {
    %c0_i32 = arith.constant 0 : i32
    %c0_i32_0 = arith.constant 0 : i32
    return %arg0, %c0_i32 : i32, i32
  }
}

</mosaic_0001>

<llo_original>
// kernel: tpu_custom_call.1
$region0: #{tpu_custom_call.1}
  #allocation0 [shape = 'u32[]', space=smem, size = 0x4, offset = 0x4, fixed_abs, tag = 'smem constant byte address 0x4 - core index']
  #allocation1 [shape = 'u32[144,128]{1,0:T(1,128)}', space=vmem, size = 0x12000, scoped, tag = 'internal scratch']
  #allocation2 [shape = 'bf16[32,384]{1,0:T(16,128)(2,1)}', space=vmem, size = 0x6000, scoped, tag = 'scratch operand']
  %s0 = inlined_call_operand.hbm [shape: bf16[2,16,128], index: 0, kind: input, shape index: {}]
  %s1 = inlined_call_operand.hbm [shape: bf16[384,512], index: 1, kind: input, shape index: {}]
  %s2 = inlined_call_operand.vmem [shape: f32[1,512], index: 2, kind: input, shape index: {}]
  %s3 = inlined_call_operand.hbm [shape: f32[32,512], index: 3, kind: output, shape index: {}]
  %s4 = sld [smem:[#allocation0]]
  $region30: #{tpu_custom_call.1} parent=0
    _
  %s6 = ssub.s32 1, %s4
  %s7 = scalar_select 0, %s6, %s4
  $region1: #{tpu_custom_call.1} parent=0
    #allocation3 [shape = 'u8[8192]{0}', space=vmem, size = 0x2000, scoped, tag = 'input window, operand 0, single buffered']
    #allocation4 [shape = 's32[1]{0}', space=sflag, size = 0x4, scoped, tag = 'scoped memory for tpu_custom_call.1']
    #allocation5 [shape = 's32[1]{0}', space=sflag, size = 0x4, scoped, tag = 'scoped memory for tpu_custom_call.1']
    #allocation6 [shape = 'u8[393216]{0}', space=vmem, size = 0x60000, scoped, tag = 'input window, operand 1, single buffered']
    #allocation7 [shape = 's32[1]{0}', space=sflag, size = 0x4, scoped, tag = 'scoped memory for tpu_custom_call.1']
    #allocation8 [shape = 'u8[65536]{0}', space=vmem, size = 0x10000, scoped, tag = 'output window, operand 0, single buffered']
    %8 = vsyncpa [#allocation4], 0
    %9 = vsyncpa [#allocation7], 0
    %10 = vsyncpa [#allocation5], 0
    // Predicated region
    $region2: #{tpu_custom_call.1} parent=1 // pred_check
      _
    $region3: #{tpu_custom_call.1} parent=1 // pred_check_branch
      %12 = sbr.rel (0) target = $region5
    $region4: #{tpu_custom_call.1} parent=1 // pred_region
      %s14 = ssub.s32 256, 256
      %15 = vsyncadd [#allocation4], %s14
      %s16 = sshll.u32 [#allocation3], 4
      %s17 = int_to_ptr.vmem [resolvable:$true] %s16
      %22 = dma.hbm_to_vmem [thread:$0]  %s0, 256, %s17, [#allocation4], 64, 64, 4
    $region5: #{tpu_custom_call.1} parent=1 // pred_fallthru
      _
    // Predicated region
    $region6: #{tpu_custom_call.1} parent=1 // pred_check
      _
    $region7: #{tpu_custom_call.1} parent=1 // pred_check_branch
      %24 = sbr.rel (0) target = $region9
    $region8: #{tpu_custom_call.1} parent=1 // pred_region
      %s26 = ssub.s32 12288, 12288
      %27 = vsyncadd [#allocation7], %s26
      %s28 = sshll.u32 [#allocation6], 4
      %s29 = int_to_ptr.vmem [resolvable:$true] %s28
      %34 = dma.hbm_to_vmem [thread:$0]  %s1, 12288, %s29, [#allocation7], 256, 256, 16
    $region9: #{tpu_custom_call.1} parent=1 // pred_fallthru
      _
    // Predicated region
    $region10: #{tpu_custom_call.1} parent=1 // pred_check
      _
    $region11: #{tpu_custom_call.1} parent=1 // pred_check_branch
      %36 = sbr.rel (0) target = $region13
    $region12: #{tpu_custom_call.1} parent=1 // pred_region
      _
    $region13: #{tpu_custom_call.1} parent=1 // pred_fallthru
      _
    // Predicated region
    $region14: #{tpu_custom_call.1} parent=1 // pred_check
      _
    $region15: #{tpu_custom_call.1} parent=1 // pred_check_branch
      %38 = sbr.rel (0) target = $region17
    $region16: #{tpu_custom_call.1} parent=1 // pred_region
      %39 = dma.done [#allocation4], 256
    $region17: #{tpu_custom_call.1} parent=1 // pred_fallthru
      _
    // Predicated region
    $region18: #{tpu_custom_call.1} parent=1 // pred_check
      _
    $region19: #{tpu_custom_call.1} parent=1 // pred_check_branch
      %41 = sbr.rel (0) target = $region21
    $region20: #{tpu_custom_call.1} parent=1 // pred_region
      %42 = dma.done [#allocation7], 12288
    $region21: #{tpu_custom_call.1} parent=1 // pred_fallthru
      _
    %v44 = vld [vmem:[#allocation3] sm:$0xf]
    %v45 = vld [vmem:[#allocation3 + $0x4] sm:$0xf]
    %v48 = vunpack.c.l.b16 %v44
    %v49 = vunpack.c.l.b16 %v45
    %v50 = vpack.c.b16 %v49, %v48
    %v52 = vshrl.u32 %v50, 16
    %v54 = vrot.slane %v52, 7
    %v55 = vshll.u32 %v50, 16
    %v57 = vor.u32 %v54, %v55
    %vm59 = vcmask 1047552
    %vm60 = vsmask.f32 7938
    %vm61 = vmand %vm59, %vm60
    %v62 = vld [vmem:[#allocation2] sm:$0xff]
    %v63 = vsel %vm61, %v57, %v62
    %64 = vst [vmem:[#allocation2] sm:$0xff] %v63
    %vm65 = vcmask 1040384
    %vm66 = vsmask.f32 256
    %vm67 = vmand %vm65, %vm66
    %v68 = vld [vmem:[#allocation2] sm:$0x1]
    %v69 = vsel %vm67, 0, %v68
    %70 = vst [vmem:[#allocation2] sm:$0x1] %v69
    %v71 = vld [vmem:[#allocation3] sm:$0xf]
    %v72 = vld [vmem:[#allocation3 + $0x4] sm:$0xf]
    %v75 = vunpack.c.l.b16 %v71
    %v76 = vunpack.c.l.b16 %v72
    %v77 = vpack.c.b16 %v76, %v75
    %79 = vst [vmem:[#allocation2 + $0x8] sm:$0xff] %v77
    %v80 = vld [vmem:[#allocation3] sm:$0xf]
    %v81 = vld [vmem:[#allocation3 + $0x4] sm:$0xf]
    %v84 = vunpack.c.l.b16 %v80
    %v85 = vunpack.c.l.b16 %v81
    %v86 = vpack.c.b16 %v85, %v84
    %v88 = vshrl.u32 %v86, 16
    %v90 = vshll.u32 %v86, 16
    %v92 = vrot.slane %v90, 1
    %v93 = vor.u32 %v88, %v92
    %vm95 = vsmask.f32 7424
    %vm96 = vmand %vm59, %vm95
    %v97 = vld [vmem:[#allocation2 + $0x10] sm:$0xff]
    %v98 = vsel %vm96, %v93, %v97
    %99 = vst [vmem:[#allocation2 + $0x10] sm:$0xff] %v98
    %vm100 = vcmask 1047559
    %vm101 = vsmask.f32 7966
    %vm102 = vmand %vm100, %vm101
    %v103 = vld [vmem:[#allocation2 + $0x10] sm:$0x80]
    %v104 = vsel %vm102, 0, %v103
    %105 = vst [vmem:[#allocation2 + $0x10] sm:$0x80] %v104
    %s106 = scalar_lea.vmem [#allocation3], 8
    %v107 = vld [vmem:[%s106] sm:$0xf]
    %v108 = vld [vmem:[%s106 + $0x4] sm:$0xf]
    %v111 = vunpack.c.l.b16 %v107
    %v112 = vunpack.c.l.b16 %v108
    %v113 = vpack.c.b16 %v112, %v111
    %v115 = vshrl.u32 %v113, 16
    %v117 = vrot.slane %v115, 7
    %v118 = vshll.u32 %v113, 16
    %v120 = vor.u32 %v117, %v118
    %v122 = vld [vmem:[#allocation2 + $0x18] sm:$0xff]
    %v123 = vsel %vm61, %v120, %v122
    %124 = vst [vmem:[#allocation2 + $0x18] sm:$0xff] %v123
    %v125 = vld [vmem:[#allocation2 + $0x18] sm:$0x1]
    %v126 = vsel %vm67, 0, %v125
    %127 = vst [vmem:[#allocation2 + $0x18] sm:$0x1] %v126
    %v128 = vld [vmem:[%s106] sm:$0xf]
    %v129 = vld [vmem:[%s106 + $0x4] sm:$0xf]
    %v132 = vunpack.c.l.b16 %v128
    %v133 = vunpack.c.l.b16 %v129
    %v134 = vpack.c.b16 %v133, %v132
    %136 = vst [vmem:[#allocation2 + $0x20] sm:$0xff] %v134
    %v137 = vld [vmem:[%s106] sm:$0xf]
    %v138 = vld [vmem:[%s106 + $0x4] sm:$0xf]
    %v141 = vunpack.c.l.b16 %v137
    %v142 = vunpack.c.l.b16 %v138
    %v143 = vpack.c.b16 %v142, %v141
    %v145 = vshrl.u32 %v143, 16
    %v147 = vshll.u32 %v143, 16
    %v149 = vrot.slane %v147, 1
    %v150 = vor.u32 %v145, %v149
    %v152 = vld [vmem:[#allocation2 + $0x28] sm:$0xff]
    %v153 = vsel %vm96, %v150, %v152
    %154 = vst [vmem:[#allocation2 + $0x28] sm:$0xff] %v153
    %v155 = vld [vmem:[#allocation2 + $0x28] sm:$0x80]
    %v156 = vsel %vm102, 0, %v155
    %157 = vst [vmem:[#allocation2 + $0x28] sm:$0x80] %v156
    %v158 = vld [vmem:[#allocation2] sm:$0xff]
    %v159 = vld [vmem:[#allocation2 + $0x8] sm:$0xff]
    %v160 = vld [vmem:[#allocation2 + $0x10] sm:$0xff]
    %v161 = vld [vmem:[#allocation2 + $0x18] sm:$0xff]
    %v162 = vld [vmem:[#allocation2 + $0x20] sm:$0xff]
    %v163 = vld [vmem:[#allocation2 + $0x28] sm:$0xff]
    %v164 = vld [vmem:[#allocation6] sm:$0xff]
    %v165 = vld [vmem:[#allocation6 + $0x8] sm:$0xff]
    %v166 = vld [vmem:[#allocation6 + $0x10] sm:$0xff]
    %v167 = vld [vmem:[#allocation6 + $0x18] sm:$0xff]
    %v168 = vld [vmem:[#allocation6 + $0x20] sm:$0xff]
    %v169 = vld [vmem:[#allocation6 + $0x28] sm:$0xff]
    %v170 = vld [vmem:[#allocation6 + $0x30] sm:$0xff]
    %v171 = vld [vmem:[#allocation6 + $0x38] sm:$0xff]
    %v172 = vld [vmem:[#allocation6 + $0x40] sm:$0xff]
    %v173 = vld [vmem:[#allocation6 + $0x48] sm:$0xff]
    %v174 = vld [vmem:[#allocation6 + $0x50] sm:$0xff]
    %v175 = vld [vmem:[#allocation6 + $0x58] sm:$0xff]
    %v176 = vld [vmem:[#allocation6 + $0x60] sm:$0xff]
    %v177 = vld [vmem:[#allocation6 + $0x68] sm:$0xff]
    %v178 = vld [vmem:[#allocation6 + $0x70] sm:$0xff]
    %v179 = vld [vmem:[#allocation6 + $0x78] sm:$0xff]
    %v180 = vld [vmem:[#allocation6 + $0x80] sm:$0xff]
    %v181 = vld [vmem:[#allocation6 + $0x88] sm:$0xff]
    %v182 = vld [vmem:[#allocation6 + $0x90] sm:$0xff]
    %v183 = vld [vmem:[#allocation6 + $0x98] sm:$0xff]
    %v184 = vld [vmem:[#allocation6 + $0xa0] sm:$0xff]
    %v185 = vld [vmem:[#allocation6 + $0xa8] sm:$0xff]
    %v186 = vld [vmem:[#allocation6 + $0xb0] sm:$0xff]
    %v187 = vld [vmem:[#allocation6 + $0xb8] sm:$0xff]
    %v188 = vld [vmem:[#allocation6 + $0xc0] sm:$0xff]
    %v189 = vld [vmem:[#allocation6 + $0xc8] sm:$0xff]
    %v190 = vld [vmem:[#allocation6 + $0xd0] sm:$0xff]
    %v191 = vld [vmem:[#allocation6 + $0xd8] sm:$0xff]
    %v192 = vld [vmem:[#allocation6 + $0xe0] sm:$0xff]
    %v193 = vld [vmem:[#allocation6 + $0xe8] sm:$0xff]
    %v194 = vld [vmem:[#allocation6 + $0xf0] sm:$0xff]
    %v195 = vld [vmem:[#allocation6 + $0xf8] sm:$0xff]
    %v196 = vld [vmem:[#allocation6 + $0x100] sm:$0xff]
    %v197 = vld [vmem:[#allocation6 + $0x108] sm:$0xff]
    %v198 = vld [vmem:[#allocation6 + $0x110] sm:$0xff]
    %v199 = vld [vmem:[#allocation6 + $0x118] sm:$0xff]
    %v200 = vld [vmem:[#allocation6 + $0x120] sm:$0xff]
    %v201 = vld [vmem:[#allocation6 + $0x128] sm:$0xff]
    %v202 = vld [vmem:[#allocation6 + $0x130] sm:$0xff]
    %v203 = vld [vmem:[#allocation6 + $0x138] sm:$0xff]
    %v204 = vld [vmem:[#allocation6 + $0x140] sm:$0xff]
    %v205 = vld [vmem:[#allocation6 + $0x148] sm:$0xff]
    %v206 = vld [vmem:[#allocation6 + $0x150] sm:$0xff]
    %v207 = vld [vmem:[#allocation6 + $0x158] sm:$0xff]
    %v208 = vld [vmem:[#allocation6 + $0x160] sm:$0xff]
    %v209 = vld [vmem:[#allocation6 + $0x168] sm:$0xff]
    %v210 = vld [vmem:[#allocation6 + $0x170] sm:$0xff]
    %v211 = vld [vmem:[#allocation6 + $0x178] sm:$0xff]
    %v212 = vld [vmem:[#allocation6 + $0x180] sm:$0xff]
    %v213 = vld [vmem:[#allocation6 + $0x188] sm:$0xff]
    %v214 = vld [vmem:[#allocation6 + $0x190] sm:$0xff]
    %v215 = vld [vmem:[#allocation6 + $0x198] sm:$0xff]
    %v216 = vld [vmem:[#allocation6 + $0x1a0] sm:$0xff]
    %v217 = vld [vmem:[#allocation6 + $0x1a8] sm:$0xff]
    %v218 = vld [vmem:[#allocation6 + $0x1b0] sm:$0xff]
    %v219 = vld [vmem:[#allocation6 + $0x1b8] sm:$0xff]
    %v220 = vld [vmem:[#allocation6 + $0x1c0] sm:$0xff]
    %v221 = vld [vmem:[#allocation6 + $0x1c8] sm:$0xff]
    %v222 = vld [vmem:[#allocation6 + $0x1d0] sm:$0xff]
    %v223 = vld [vmem:[#allocation6 + $0x1d8] sm:$0xff]
    %v224 = vld [vmem:[#allocation6 + $0x1e0] sm:$0xff]
    %v225 = vld [vmem:[#allocation6 + $0x1e8] sm:$0xff]
    %v226 = vld [vmem:[#allocation6 + $0x1f0] sm:$0xff]
    %v227 = vld [vmem:[#allocation6 + $0x1f8] sm:$0xff]
    %v228 = vld [vmem:[#allocation6 + $0x200] sm:$0xff]
    %v229 = vld [vmem:[#allocation6 + $0x208] sm:$0xff]
    %v230 = vld [vmem:[#allocation6 + $0x210] sm:$0xff]
    %v231 = vld [vmem:[#allocation6 + $0x218] sm:$0xff]
    %v232 = vld [vmem:[#allocation6 + $0x220] sm:$0xff]
    %v233 = vld [vmem:[#allocation6 + $0x228] sm:$0xff]
    %v234 = vld [vmem:[#allocation6 + $0x230] sm:$0xff]
    %v235 = vld [vmem:[#allocation6 + $0x238] sm:$0xff]
    %v236 = vld [vmem:[#allocation6 + $0x240] sm:$0xff]
    %v237 = vld [vmem:[#allocation6 + $0x248] sm:$0xff]
    %v238 = vld [vmem:[#allocation6 + $0x250] sm:$0xff]
    %v239 = vld [vmem:[#allocation6 + $0x258] sm:$0xff]
    %v240 = vld [vmem:[#allocation6 + $0x260] sm:$0xff]
    %v241 = vld [vmem:[#allocation6 + $0x268] sm:$0xff]
    %v242 = vld [vmem:[#allocation6 + $0x270] sm:$0xff]
    %v243 = vld [vmem:[#allocation6 + $0x278] sm:$0xff]
    %v244 = vld [vmem:[#allocation6 + $0x280] sm:$0xff]
    %v245 = vld [vmem:[#allocation6 + $0x288] sm:$0xff]
    %v246 = vld [vmem:[#allocation6 + $0x290] sm:$0xff]
    %v247 = vld [vmem:[#allocation6 + $0x298] sm:$0xff]
    %v248 = vld [vmem:[#allocation6 + $0x2a0] sm:$0xff]
    %v249 = vld [vmem:[#allocation6 + $0x2a8] sm:$0xff]
    %v250 = vld [vmem:[#allocation6 + $0x2b0] sm:$0xff]
    %v251 = vld [vmem:[#allocation6 + $0x2b8] sm:$0xff]
    %v252 = vld [vmem:[#allocation6 + $0x2c0] sm:$0xff]
    %v253 = vld [vmem:[#allocation6 + $0x2c8] sm:$0xff]
    %v254 = vld [vmem:[#allocation6 + $0x2d0] sm:$0xff]
    %v255 = vld [vmem:[#allocation6 + $0x2d8] sm:$0xff]
    %v256 = vld [vmem:[#allocation6 + $0x2e0] sm:$0xff]
    %v257 = vld [vmem:[#allocation6 + $0x2e8] sm:$0xff]
    %v258 = vld [vmem:[#allocation6 + $0x2f0] sm:$0xff]
    %v259 = vld [vmem:[#allocation6 + $0x2f8] sm:$0xff]
    %v260 = vld [vmem:[%s2] sm:$0xf]
    %v262 = vlaneseq
    %v263 = vshrl.u32 %v262, 7
    %v264 = vsub.s32 0, %v263
    %v265 = vrot.slane %v260, %v264
    %v266 = vlaneseq
    %v267 = vshrl.u32 %v266, 7
    %v268 = vsub.s32 1, %v267
    %v269 = vrot.slane %v260, %v268
    %v270 = vlaneseq
    %v271 = vshrl.u32 %v270, 7
    %v272 = vsub.s32 2, %v271
    %v273 = vrot.slane %v260, %v272
    %v274 = vlaneseq
    %v275 = vshrl.u32 %v274, 7
    %v276 = vsub.s32 3, %v275
    %v277 = vrot.slane %v260, %v276
    %v378 = vunpack.c.l.b16 %v164
    %v379 = vunpack.c.h.b16 %v164
    %v380 = vunpack.c.l.b16 %v165
    %v381 = vunpack.c.h.b16 %v165
    %v382 = vunpack.c.l.b16 %v166
    %v383 = vunpack.c.h.b16 %v166
    %v384 = vunpack.c.l.b16 %v167
    %v385 = vunpack.c.h.b16 %v167
    %v386 = vunpack.c.l.b16 %v168
    %v387 = vunpack.c.h.b16 %v168
    %v388 = vunpack.c.l.b16 %v169
    %v389 = vunpack.c.h.b16 %v169
    %v390 = vunpack.c.l.b16 %v170
    %v391 = vunpack.c.h.b16 %v170
    %v392 = vunpack.c.l.b16 %v171
    %v393 = vunpack.c.h.b16 %v171
    %v394 = vunpack.c.l.b16 %v172
    %v395 = vunpack.c.h.b16 %v172
    %v396 = vunpack.c.l.b16 %v173
    %v397 = vunpack.c.h.b16 %v173
    %v398 = vunpack.c.l.b16 %v174
    %v399 = vunpack.c.h.b16 %v174
    %v400 = vunpack.c.l.b16 %v175
    %v401 = vunpack.c.h.b16 %v175
    %v402 = vunpack.c.l.b16 %v176
    %v403 = vunpack.c.h.b16 %v176
    %v404 = vunpack.c.l.b16 %v177
    %v405 = vunpack.c.h.b16 %v177
    %v406 = vunpack.c.l.b16 %v178
    %v407 = vunpack.c.h.b16 %v178
    %v408 = vunpack.c.l.b16 %v179
    %v409 = vunpack.c.h.b16 %v179
    %v410 = vunpack.c.l.b16 %v180
    %v411 = vunpack.c.h.b16 %v180
    %v412 = vunpack.c.l.b16 %v181
    %v413 = vunpack.c.h.b16 %v181
    %v414 = vunpack.c.l.b16 %v182
    %v415 = vunpack.c.h.b16 %v182
    %v416 = vunpack.c.l.b16 %v183
    %v417 = vunpack.c.h.b16 %v183
    %v418 = vunpack.c.l.b16 %v184
    %v419 = vunpack.c.h.b16 %v184
    %v420 = vunpack.c.l.b16 %v185
    %v421 = vunpack.c.h.b16 %v185
    %v422 = vunpack.c.l.b16 %v186
    %v423 = vunpack.c.h.b16 %v186
    %v424 = vunpack.c.l.b16 %v187
    %v425 = vunpack.c.h.b16 %v187
    %v426 = vunpack.c.l.b16 %v188
    %v427 = vunpack.c.h.b16 %v188
    %v428 = vunpack.c.l.b16 %v189
    %v429 = vunpack.c.h.b16 %v189
    %v430 = vunpack.c.l.b16 %v190
    %v431 = vunpack.c.h.b16 %v190
    %v432 = vunpack.c.l.b16 %v191
    %v433 = vunpack.c.h.b16 %v191
    %v434 = vunpack.c.l.b16 %v192
    %v435 = vunpack.c.h.b16 %v192
    %v436 = vunpack.c.l.b16 %v193
    %v437 = vunpack.c.h.b16 %v193
    %v438 = vunpack.c.l.b16 %v194
    %v439 = vunpack.c.h.b16 %v194
    %v440 = vunpack.c.l.b16 %v195
    %v441 = vunpack.c.h.b16 %v195
    %v442 = vunpack.c.l.b16 %v196
    %v443 = vunpack.c.h.b16 %v196
    %v444 = vunpack.c.l.b16 %v197
    %v445 = vunpack.c.h.b16 %v197
    %v446 = vunpack.c.l.b16 %v198
    %v447 = vunpack.c.h.b16 %v198
    %v448 = vunpack.c.l.b16 %v199
    %v449 = vunpack.c.h.b16 %v199
    %v450 = vunpack.c.l.b16 %v200
    %v451 = vunpack.c.h.b16 %v200
    %v452 = vunpack.c.l.b16 %v201
    %v453 = vunpack.c.h.b16 %v201
    %v454 = vunpack.c.l.b16 %v202
    %v455 = vunpack.c.h.b16 %v202
    %v456 = vunpack.c.l.b16 %v203
    %v457 = vunpack.c.h.b16 %v203
    %v458 = vunpack.c.l.b16 %v204
    %v459 = vunpack.c.h.b16 %v204
    %v460 = vunpack.c.l.b16 %v205
    %v461 = vunpack.c.h.b16 %v205
    %v462 = vunpack.c.l.b16 %v206
    %v463 = vunpack.c.h.b16 %v206
    %v464 = vunpack.c.l.b16 %v207
    %v465 = vunpack.c.h.b16 %v207
    %v466 = vunpack.c.l.b16 %v208
    %v467 = vunpack.c.h.b16 %v208
    %v468 = vunpack.c.l.b16 %v209
    %v469 = vunpack.c.h.b16 %v209
    %v470 = vunpack.c.l.b16 %v210
    %v471 = vunpack.c.h.b16 %v210
    %v472 = vunpack.c.l.b16 %v211
    %v473 = vunpack.c.h.b16 %v211
    %v474 = vunpack.c.l.b16 %v212
    %v475 = vunpack.c.h.b16 %v212
    %v476 = vunpack.c.l.b16 %v213
    %v477 = vunpack.c.h.b16 %v213
    %v478 = vunpack.c.l.b16 %v214
    %v479 = vunpack.c.h.b16 %v214
    %v480 = vunpack.c.l.b16 %v215
    %v481 = vunpack.c.h.b16 %v215
    %v482 = vunpack.c.l.b16 %v216
    %v483 = vunpack.c.h.b16 %v216
    %v484 = vunpack.c.l.b16 %v217
    %v485 = vunpack.c.h.b16 %v217
    %v486 = vunpack.c.l.b16 %v218
    %v487 = vunpack.c.h.b16 %v218
    %v488 = vunpack.c.l.b16 %v219
    %v489 = vunpack.c.h.b16 %v219
    %v490 = vunpack.c.l.b16 %v220
    %v491 = vunpack.c.h.b16 %v220
    %v492 = vunpack.c.l.b16 %v221
    %v493 = vunpack.c.h.b16 %v221
    %v494 = vunpack.c.l.b16 %v222
    %v495 = vunpack.c.h.b16 %v222
    %v496 = vunpack.c.l.b16 %v223
    %v497 = vunpack.c.h.b16 %v223
    %v498 = vunpack.c.l.b16 %v224
    %v499 = vunpack.c.h.b16 %v224
    %v500 = vunpack.c.l.b16 %v225
    %v501 = vunpack.c.h.b16 %v225
    %v502 = vunpack.c.l.b16 %v226
    %v503 = vunpack.c.h.b16 %v226
    %v504 = vunpack.c.l.b16 %v227
    %v505 = vunpack.c.h.b16 %v227
    %v506 = vunpack.c.l.b16 %v228
    %v507 = vunpack.c.h.b16 %v228
    %v508 = vunpack.c.l.b16 %v229
    %v509 = vunpack.c.h.b16 %v229
    %v510 = vunpack.c.l.b16 %v230
    %v511 = vunpack.c.h.b16 %v230
    %v512 = vunpack.c.l.b16 %v231
    %v513 = vunpack.c.h.b16 %v231
    %v514 = vunpack.c.l.b16 %v232
    %v515 = vunpack.c.h.b16 %v232
    %v516 = vunpack.c.l.b16 %v233
    %v517 = vunpack.c.h.b16 %v233
    %v518 = vunpack.c.l.b16 %v234
    %v519 = vunpack.c.h.b16 %v234
    %v520 = vunpack.c.l.b16 %v235
    %v521 = vunpack.c.h.b16 %v235
    %v522 = vunpack.c.l.b16 %v236
    %v523 = vunpack.c.h.b16 %v236
    %v524 = vunpack.c.l.b16 %v237
    %v525 = vunpack.c.h.b16 %v237
    %v526 = vunpack.c.l.b16 %v238
    %v527 = vunpack.c.h.b16 %v238
    %v528 = vunpack.c.l.b16 %v239
    %v529 = vunpack.c.h.b16 %v239
    %v530 = vunpack.c.l.b16 %v240
    %v531 = vunpack.c.h.b16 %v240
    %v532 = vunpack.c.l.b16 %v241
    %v533 = vunpack.c.h.b16 %v241
    %v534 = vunpack.c.l.b16 %v242
    %v535 = vunpack.c.h.b16 %v242
    %v536 = vunpack.c.l.b16 %v243
    %v537 = vunpack.c.h.b16 %v243
    %v538 = vunpack.c.l.b16 %v244
    %v539 = vunpack.c.h.b16 %v244
    %v540 = vunpack.c.l.b16 %v245
    %v541 = vunpack.c.h.b16 %v245
    %v542 = vunpack.c.l.b16 %v246
    %v543 = vunpack.c.h.b16 %v246
    %v544 = vunpack.c.l.b16 %v247
    %v545 = vunpack.c.h.b16 %v247
    %v546 = vunpack.c.l.b16 %v248
    %v547 = vunpack.c.h.b16 %v248
    %v548 = vunpack.c.l.b16 %v249
    %v549 = vunpack.c.h.b16 %v249
    %v550 = vunpack.c.l.b16 %v250
    %v551 = vunpack.c.h.b16 %v250
    %v552 = vunpack.c.l.b16 %v251
    %v553 = vunpack.c.h.b16 %v251
    %v554 = vunpack.c.l.b16 %v252
    %v555 = vunpack.c.h.b16 %v252
    %v556 = vunpack.c.l.b16 %v253
    %v557 = vunpack.c.h.b16 %v253
    %v558 = vunpack.c.l.b16 %v254
    %v559 = vunpack.c.h.b16 %v254
    %v560 = vunpack.c.l.b16 %v255
    %v561 = vunpack.c.h.b16 %v255
    %v562 = vunpack.c.l.b16 %v256
    %v563 = vunpack.c.h.b16 %v256
    %v564 = vunpack.c.l.b16 %v257
    %v565 = vunpack.c.h.b16 %v257
    %v566 = vunpack.c.l.b16 %v258
    %v567 = vunpack.c.h.b16 %v258
    %v568 = vunpack.c.l.b16 %v259
    %v569 = vunpack.c.h.b16 %v259
    %v570 = vpack.c.b16 %v382, %v378
    %v571 = vpack.c.b16 %v383, %v379
    %v572 = vpack.c.b16 %v384, %v380
    %v573 = vpack.c.b16 %v385, %v381
    %v574 = vpack.c.b16 %v390, %v386
    %v575 = vpack.c.b16 %v391, %v387
    %v576 = vpack.c.b16 %v392, %v388
    %v577 = vpack.c.b16 %v393, %v389
    %v578 = vpack.c.b16 %v398, %v394
    %v579 = vpack.c.b16 %v399, %v395
    %v580 = vpack.c.b16 %v400, %v396
    %v581 = vpack.c.b16 %v401, %v397
    %v582 = vpack.c.b16 %v406, %v402
    %v583 = vpack.c.b16 %v407, %v403
    %v584 = vpack.c.b16 %v408, %v404
    %v585 = vpack.c.b16 %v409, %v405
    %v586 = vpack.c.b16 %v414, %v410
    %v587 = vpack.c.b16 %v415, %v411
    %v588 = vpack.c.b16 %v416, %v412
    %v589 = vpack.c.b16 %v417, %v413
    %v590 = vpack.c.b16 %v422, %v418
    %v591 = vpack.c.b16 %v423, %v419
    %v592 = vpack.c.b16 %v424, %v420
    %v593 = vpack.c.b16 %v425, %v421
    %v594 = vpack.c.b16 %v430, %v426
    %v595 = vpack.c.b16 %v431, %v427
    %v596 = vpack.c.b16 %v432, %v428
    %v597 = vpack.c.b16 %v433, %v429
    %v598 = vpack.c.b16 %v438, %v434
    %v599 = vpack.c.b16 %v439, %v435
    %v600 = vpack.c.b16 %v440, %v436
    %v601 = vpack.c.b16 %v441, %v437
    %v602 = vpack.c.b16 %v446, %v442
    %v603 = vpack.c.b16 %v447, %v443
    %v604 = vpack.c.b16 %v448, %v444
    %v605 = vpack.c.b16 %v449, %v445
    %v606 = vpack.c.b16 %v454, %v450
    %v607 = vpack.c.b16 %v455, %v451
    %v608 = vpack.c.b16 %v456, %v452
    %v609 = vpack.c.b16 %v457, %v453
    %v610 = vpack.c.b16 %v462, %v458
    %v611 = vpack.c.b16 %v463, %v459
    %v612 = vpack.c.b16 %v464, %v460
    %v613 = vpack.c.b16 %v465, %v461
    %v614 = vpack.c.b16 %v470, %v466
    %v615 = vpack.c.b16 %v471, %v467
    %v616 = vpack.c.b16 %v472, %v468
    %v617 = vpack.c.b16 %v473, %v469
    %v618 = vpack.c.b16 %v478, %v474
    %v619 = vpack.c.b16 %v479, %v475
    %v620 = vpack.c.b16 %v480, %v476
    %v621 = vpack.c.b16 %v481, %v477
    %v622 = vpack.c.b16 %v486, %v482
    %v623 = vpack.c.b16 %v487, %v483
    %v624 = vpack.c.b16 %v488, %v484
    %v625 = vpack.c.b16 %v489, %v485
    %v626 = vpack.c.b16 %v494, %v490
    %v627 = vpack.c.b16 %v495, %v491
    %v628 = vpack.c.b16 %v496, %v492
    %v629 = vpack.c.b16 %v497, %v493
    %v630 = vpack.c.b16 %v502, %v498
    %v631 = vpack.c.b16 %v503, %v499
    %v632 = vpack.c.b16 %v504, %v500
    %v633 = vpack.c.b16 %v505, %v501
    %v634 = vpack.c.b16 %v510, %v506
    %v635 = vpack.c.b16 %v511, %v507
    %v636 = vpack.c.b16 %v512, %v508
    %v637 = vpack.c.b16 %v513, %v509
    %v638 = vpack.c.b16 %v518, %v514
    %v639 = vpack.c.b16 %v519, %v515
    %v640 = vpack.c.b16 %v520, %v516
    %v641 = vpack.c.b16 %v521, %v517
    %v642 = vpack.c.b16 %v526, %v522
    %v643 = vpack.c.b16 %v527, %v523
    %v644 = vpack.c.b16 %v528, %v524
    %v645 = vpack.c.b16 %v529, %v525
    %v646 = vpack.c.b16 %v534, %v530
    %v647 = vpack.c.b16 %v535, %v531
    %v648 = vpack.c.b16 %v536, %v532
    %v649 = vpack.c.b16 %v537, %v533
    %v650 = vpack.c.b16 %v542, %v538
    %v651 = vpack.c.b16 %v543, %v539
    %v652 = vpack.c.b16 %v544, %v540
    %v653 = vpack.c.b16 %v545, %v541
    %v654 = vpack.c.b16 %v550, %v546
    %v655 = vpack.c.b16 %v551, %v547
    %v656 = vpack.c.b16 %v552, %v548
    %v657 = vpack.c.b16 %v553, %v549
    %v658 = vpack.c.b16 %v558, %v554
    %v659 = vpack.c.b16 %v559, %v555
    %v660 = vpack.c.b16 %v560, %v556
    %v661 = vpack.c.b16 %v561, %v557
    %v662 = vpack.c.b16 %v566, %v562
    %v663 = vpack.c.b16 %v567, %v563
    %v664 = vpack.c.b16 %v568, %v564
    %v665 = vpack.c.b16 %v569, %v565
    %762 = vmatprep.subr.bf16.mxu0 %v571
    %763 = vmatpush1.bf16.msra.mxu0 %v570
    %764 = vmatprep.subr.bf16.mxu0 %v575
    %765 = vmatpush1.bf16.msra.mxu0 %v574
    %766 = vmatprep.subr.bf16.mxu0 %v579
    %767 = vmatpush1.bf16.msra.mxu0 %v578
    %768 = vmatprep.subr.bf16.mxu0 %v583
    %769 = vmatpush1.bf16.msra.mxu0 %v582
    %770 = vmatprep.subr.bf16.mxu0 %v587
    %771 = vmatpush1.bf16.msra.mxu0 %v586
    %772 = vmatprep.subr.bf16.mxu0 %v591
    %773 = vmatpush1.bf16.msra.mxu0 %v590
    %774 = vmatprep.subr.bf16.mxu0 %v595
    %775 = vmatpush1.bf16.msra.mxu0 %v594
    %776 = vmatprep.subr.bf16.mxu0 %v599
    %777 = vmatpush1.bf16.msra.mxu0 %v598
    %778 = vmatprep.subr.bf16.mxu0 %v603
    %779 = vmatpush1.bf16.msra.mxu0 %v602
    %780 = vmatprep.subr.bf16.mxu0 %v607
    %781 = vmatpush1.bf16.msra.mxu0 %v606
    %782 = vmatprep.subr.bf16.mxu0 %v611
    %783 = vmatpush1.bf16.msra.mxu0 %v610
    %784 = vmatprep.subr.bf16.mxu0 %v615
    %785 = vmatpush1.bf16.msra.mxu0 %v614
    %786 = vmatprep.subr.bf16.mxu0 %v619
    %787 = vmatpush1.bf16.msra.mxu0 %v618
    %788 = vmatprep.subr.bf16.mxu0 %v623
    %789 = vmatpush1.bf16.msra.mxu0 %v622
    %790 = vmatprep.subr.bf16.mxu0 %v627
    %791 = vmatpush1.bf16.msra.mxu0 %v626
    %792 = vmatprep.subr.bf16.mxu0 %v631
    %793 = vmatpush1.bf16.msra.mxu0 %v630
    %794 = vmatprep.mubr.bf16.mxu0 %v159
    %795 = vmatmul.mubr.bf16.gmra.mrb[0].mxu0 %v158
    %v796 = vpop.f32.mrb[0].mxu0
    %v797 = vadd.f32 %v265, %v796
    %v798 = vpop.f32.mrb[0].mxu0
    %v799 = vadd.f32 %v269, %v798
    %v800 = vpop.f32.mrb[0].mxu0
    %v801 = vadd.f32 %v265, %v800
    %v802 = vpop.f32.mrb[0].mxu0
    %v803 = vadd.f32 %v269, %v802
    %804 = vmatprep.mubr.bf16.mxu0 %v162
    %805 = vmatmul.mubr.bf16.gmra.mrb[0].mxu0 %v161
    %v806 = vpop.f32.mrb[0].mxu0
    %v807 = vadd.f32 %v265, %v806
    %v808 = vpop.f32.mrb[0].mxu0
    %v809 = vadd.f32 %v269, %v808
    %v810 = vpop.f32.mrb[0].mxu0
    %v811 = vadd.f32 %v265, %v810
    %v812 = vpop.f32.mrb[0].mxu0
    %v813 = vadd.f32 %v269, %v812
    %814 = vdwg.mxu0
    %815 = vmatprep.subr.bf16.mxu0 %v635
    %816 = vmatpush1.bf16.msra.mxu0 %v634
    %817 = vmatprep.subr.bf16.mxu0 %v639
    %818 = vmatpush1.bf16.msra.mxu0 %v638
    %819 = vmatprep.subr.bf16.mxu0 %v643
    %820 = vmatpush1.bf16.msra.mxu0 %v642
    %821 = vmatprep.subr.bf16.mxu0 %v647
    %822 = vmatpush1.bf16.msra.mxu0 %v646
    %823 = vmatprep.subr.bf16.mxu0 %v651
    %824 = vmatpush1.bf16.msra.mxu0 %v650
    %825 = vmatprep.subr.bf16.mxu0 %v655
    %826 = vmatpush1.bf16.msra.mxu0 %v654
    %827 = vmatprep.subr.bf16.mxu0 %v659
    %828 = vmatpush1.bf16.msra.mxu0 %v658
    %829 = vmatprep.subr.bf16.mxu0 %v663
    %830 = vmatpush1.bf16.msra.mxu0 %v662
    %831 = vmatprep.subr.bf16.mxu0 0
    %832 = vmatpush1.bf16.msra.mxu0 0
    %833 = vmatprep.subr.bf16.mxu0 0
    %834 = vmatpush1.bf16.msra.mxu0 0
    %835 = vmatprep.subr.bf16.mxu0 0
    %836 = vmatpush1.bf16.msra.mxu0 0
    %837 = vmatprep.subr.bf16.mxu0 0
    %838 = vmatpush1.bf16.msra.mxu0 0
    %839 = vmatprep.subr.bf16.mxu0 0
    %840 = vmatpush1.bf16.msra.mxu0 0
    %841 = vmatprep.subr.bf16.mxu0 0
    %842 = vmatpush1.bf16.msra.mxu0 0
    %843 = vmatprep.subr.bf16.mxu0 0
    %844 = vmatpush1.bf16.msra.mxu0 0
    %845 = vmatprep.subr.bf16.mxu0 0
    %846 = vmatpush1.bf16.msra.mxu0 0
    %847 = vmatprep.mubr.bf16.mxu0 0
    %848 = vmatmul.mubr.bf16.gmra.mrb[0].mxu0 %v160
    %v849 = vpop.f32.mrb[0].mxu0
    %v850 = vadd.f32 %v797, %v849
    %v851 = vpop.f32.mrb[0].mxu0
    %v852 = vadd.f32 %v799, %v851
    %v853 = vpop.f32.mrb[0].mxu0
    %v854 = vadd.f32 %v801, %v853
    %v855 = vpop.f32.mrb[0].mxu0
    %v856 = vadd.f32 %v803, %v855
    %857 = vmatprep.mubr.bf16.mxu0 0
    %858 = vmatmul.mubr.bf16.gmra.mrb[0].mxu0 %v163
    %v859 = vpop.f32.mrb[0].mxu0
    %v860 = vadd.f32 %v807, %v859
    %v861 = vpop.f32.mrb[0].mxu0
    %v862 = vadd.f32 %v809, %v861
    %v863 = vpop.f32.mrb[0].mxu0
    %v864 = vadd.f32 %v811, %v863
    %v865 = vpop.f32.mrb[0].mxu0
    %v866 = vadd.f32 %v813, %v865
    %867 = vdwg.mxu0
    %868 = vmatprep.subr.bf16.mxu0 %v573
    %869 = vmatpush1.bf16.msra.mxu0 %v572
    %870 = vmatprep.subr.bf16.mxu0 %v577
    %871 = vmatpush1.bf16.msra.mxu0 %v576
    %872 = vmatprep.subr.bf16.mxu0 %v581
    %873 = vmatpush1.bf16.msra.mxu0 %v580
    %874 = vmatprep.subr.bf16.mxu0 %v585
    %875 = vmatpush1.bf16.msra.mxu0 %v584
    %876 = vmatprep.subr.bf16.mxu0 %v589
    %877 = vmatpush1.bf16.msra.mxu0 %v588
    %878 = vmatprep.subr.bf16.mxu0 %v593
    %879 = vmatpush1.bf16.msra.mxu0 %v592
    %880 = vmatprep.subr.bf16.mxu0 %v597
    %881 = vmatpush1.bf16.msra.mxu0 %v596
    %882 = vmatprep.subr.bf16.mxu0 %v601
    %883 = vmatpush1.bf16.msra.mxu0 %v600
    %884 = vmatprep.subr.bf16.mxu0 %v605
    %885 = vmatpush1.bf16.msra.mxu0 %v604
    %886 = vmatprep.subr.bf16.mxu0 %v609
    %887 = vmatpush1.bf16.msra.mxu0 %v608
    %888 = vmatprep.subr.bf16.mxu0 %v613
    %889 = vmatpush1.bf16.msra.mxu0 %v612
    %890 = vmatprep.subr.bf16.mxu0 %v617
    %891 = vmatpush1.bf16.msra.mxu0 %v616
    %892 = vmatprep.subr.bf16.mxu0 %v621
    %893 = vmatpush1.bf16.msra.mxu0 %v620
    %894 = vmatprep.subr.bf16.mxu0 %v625
    %895 = vmatpush1.bf16.msra.mxu0 %v624
    %896 = vmatprep.subr.bf16.mxu0 %v629
    %897 = vmatpush1.bf16.msra.mxu0 %v628
    %898 = vmatprep.subr.bf16.mxu0 %v633
    %899 = vmatpush1.bf16.msra.mxu0 %v632
    %900 = vmatprep.mubr.bf16.mxu0 %v159
    %901 = vmatmul.mubr.bf16.gmra.mrb[0].mxu0 %v158
    %v902 = vpop.f32.mrb[0].mxu0
    %v903 = vadd.f32 %v273, %v902
    %v904 = vpop.f32.mrb[0].mxu0
    %v905 = vadd.f32 %v277, %v904
    %v906 = vpop.f32.mrb[0].mxu0
    %v907 = vadd.f32 %v273, %v906
    %v908 = vpop.f32.mrb[0].mxu0
    %v909 = vadd.f32 %v277, %v908
    %910 = vmatprep.mubr.bf16.mxu0 %v162
    %911 = vmatmul.mubr.bf16.gmra.mrb[0].mxu0 %v161
    %v912 = vpop.f32.mrb[0].mxu0
    %v913 = vadd.f32 %v273, %v912
    %v914 = vpop.f32.mrb[0].mxu0
    %v915 = vadd.f32 %v277, %v914
    %v916 = vpop.f32.mrb[0].mxu0
    %v917 = vadd.f32 %v273, %v916
    %v918 = vpop.f32.mrb[0].mxu0
    %v919 = vadd.f32 %v277, %v918
    %920 = vdwg.mxu0
    %921 = vmatprep.subr.bf16.mxu0 %v637
    %922 = vmatpush1.bf16.msra.mxu0 %v636
    %923 = vmatprep.subr.bf16.mxu0 %v641
    %924 = vmatpush1.bf16.msra.mxu0 %v640
    %925 = vmatprep.subr.bf16.mxu0 %v645
    %926 = vmatpush1.bf16.msra.mxu0 %v644
    %927 = vmatprep.subr.bf16.mxu0 %v649
    %928 = vmatpush1.bf16.msra.mxu0 %v648
    %929 = vmatprep.subr.bf16.mxu0 %v653
    %930 = vmatpush1.bf16.msra.mxu0 %v652
    %931 = vmatprep.subr.bf16.mxu0 %v657
    %932 = vmatpush1.bf16.msra.mxu0 %v656
    %933 = vmatprep.subr.bf16.mxu0 %v661
    %934 = vmatpush1.bf16.msra.mxu0 %v660
    %935 = vmatprep.subr.bf16.mxu0 %v665
    %936 = vmatpush1.bf16.msra.mxu0 %v664
    %937 = vmatprep.subr.bf16.mxu0 0
    %938 = vmatpush1.bf16.msra.mxu0 0
    %939 = vmatprep.subr.bf16.mxu0 0
    %940 = vmatpush1.bf16.msra.mxu0 0
    %941 = vmatprep.subr.bf16.mxu0 0
    %942 = vmatpush1.bf16.msra.mxu0 0
    %943 = vmatprep.subr.bf16.mxu0 0
    %944 = vmatpush1.bf16.msra.mxu0 0
    %945 = vmatprep.subr.bf16.mxu0 0
    %946 = vmatpush1.bf16.msra.mxu0 0
    %947 = vmatprep.subr.bf16.mxu0 0
    %948 = vmatpush1.bf16.msra.mxu0 0
    %949 = vmatprep.subr.bf16.mxu0 0
    %950 = vmatpush1.bf16.msra.mxu0 0
    %951 = vmatprep.subr.bf16.mxu0 0
    %952 = vmatpush1.bf16.msra.mxu0 0
    %953 = vmatprep.mubr.bf16.mxu0 0
    %954 = vmatmul.mubr.bf16.gmra.mrb[0].mxu0 %v160
    %v955 = vpop.f32.mrb[0].mxu0
    %v956 = vadd.f32 %v903, %v955
    %v957 = vpop.f32.mrb[0].mxu0
    %v958 = vadd.f32 %v905, %v957
    %v959 = vpop.f32.mrb[0].mxu0
    %v960 = vadd.f32 %v907, %v959
    %v961 = vpop.f32.mrb[0].mxu0
    %v962 = vadd.f32 %v909, %v961
    %963 = vmatprep.mubr.bf16.mxu0 0
    %964 = vmatmul.mubr.bf16.gmra.mrb[0].mxu0 %v163
    %v965 = vpop.f32.mrb[0].mxu0
    %v966 = vadd.f32 %v913, %v965
    %v967 = vpop.f32.mrb[0].mxu0
    %v968 = vadd.f32 %v915, %v967
    %v969 = vpop.f32.mrb[0].mxu0
    %v970 = vadd.f32 %v917, %v969
    %v971 = vpop.f32.mrb[0].mxu0
    %v972 = vadd.f32 %v919, %v971
    %973 = vdwg.mxu0
    %v974 = vmax.f32 %v850, 0.0
    %v975 = vmax.f32 %v852, 0.0
    %v976 = vmax.f32 %v956, 0.0
    %v977 = vmax.f32 %v958, 0.0
    %v978 = vmax.f32 %v854, 0.0
    %v979 = vmax.f32 %v856, 0.0
    %v980 = vmax.f32 %v960, 0.0
    %v981 = vmax.f32 %v962, 0.0
    %v982 = vmax.f32 %v860, 0.0
    %v983 = vmax.f32 %v862, 0.0
    %v984 = vmax.f32 %v966, 0.0
    %v985 = vmax.f32 %v968, 0.0
    %v986 = vmax.f32 %v864, 0.0
    %v987 = vmax.f32 %v866, 0.0
    %v988 = vmax.f32 %v970, 0.0
    %v989 = vmax.f32 %v972, 0.0
    %990 = vst [vmem:[#allocation8] sm:$0xff] %v974
    %991 = vst [vmem:[#allocation8 + $0x8] sm:$0xff] %v975
    %992 = vst [vmem:[#allocation8 + $0x10] sm:$0xff] %v976
    %993 = vst [vmem:[#allocation8 + $0x18] sm:$0xff] %v977
    %994 = vst [vmem:[#allocation8 + $0x20] sm:$0xff] %v978
    %995 = vst [vmem:[#allocation8 + $0x28] sm:$0xff] %v979
    %996 = vst [vmem:[#allocation8 + $0x30] sm:$0xff] %v980
    %997 = vst [vmem:[#allocation8 + $0x38] sm:$0xff] %v981
    %998 = vst [vmem:[#allocation8 + $0x40] sm:$0xff] %v982
    %999 = vst [vmem:[#allocation8 + $0x48] sm:$0xff] %v983
    %1000 = vst [vmem:[#allocation8 + $0x50] sm:$0xff] %v984
    %1001 = vst [vmem:[#allocation8 + $0x58] sm:$0xff] %v985
    %1002 = vst [vmem:[#allocation8 + $0x60] sm:$0xff] %v986
    %1003 = vst [vmem:[#allocation8 + $0x68] sm:$0xff] %v987
    %1004 = vst [vmem:[#allocation8 + $0x70] sm:$0xff] %v988
    %1005 = vst [vmem:[#allocation8 + $0x78] sm:$0xff] %v989
    // Predicated region
    $region22: #{tpu_custom_call.1} parent=1 // pred_check
      _
    $region23: #{tpu_custom_call.1} parent=1 // pred_check_branch
      %1007 = sbr.rel (0) target = $region25
    $region24: #{tpu_custom_call.1} parent=1 // pred_region
      %s1009 = ssub.s32 2048, 2048
      %1010 = vsyncadd [#allocation5], %s1009
      %s1011 = sshll.u32 [#allocation8], 4
      %s1012 = int_to_ptr.vmem [resolvable:$true] %s1011
      %1017 = dma.vmem_to_hbm [thread:$0]  %s1012, 2048, %s3, [#allocation5], 512, 512, 32
    $region25: #{tpu_custom_call.1} parent=1 // pred_fallthru
      _
    // Predicated region
    $region26: #{tpu_custom_call.1} parent=1 // pred_check
      _
    $region27: #{tpu_custom_call.1} parent=1 // pred_check_branch
      %1019 = sbr.rel (0) target = $region29
    $region28: #{tpu_custom_call.1} parent=1 // pred_region
      %1020 = dma.done [#allocation5], 2048
    $region29: #{tpu_custom_call.1} parent=1 // pred_fallthru
      _
    %1021 = vsyncpa [#allocation4], 1
    %1022 = vsyncpa [#allocation7], 1
    %1023 = vsyncpa [#allocation5], 1

</llo_original>
